<compile_context>
chip_gen: v7x
topology: tpu7x:2x2x1
jax: 0.10.0
libtpu: 0.0.40
codegen_flags: <defaults>
</compile_context>

<pallas_src>
import functools

import jax
import jax.numpy as jnp
from jax.experimental import pallas as pl
from jax.experimental.pallas import tpu as pltpu

_LANE = 128


# --------------------------------------------------------------------------- #
# Hardware introspection (defensive: safe fallbacks if queries fail).
# --------------------------------------------------------------------------- #
def _tpu_generation_info():
    """Returns (vmem_capacity_bytes, num_tensorcores_per_chip, is_v5e)."""
    vmem_capacity = 128 * 2**20
    try:
        vmem_capacity = int(pltpu.get_tpu_info().vmem_capacity_bytes)
    except Exception:
        pass
    kind = ""
    try:
        kind = jax.devices()[0].device_kind.lower()
    except Exception:
        pass
    is_v5e = ("v5 lite" in kind) or ("v5e" in kind) or ("v5litepod" in kind)
    # v7x exposes 64 MiB VMEM per TensorCore and has 2 TCs per chip.
    num_tc = 2 if (("v7" in kind) or (vmem_capacity <= 64 * 2**20)) else 1
    return vmem_capacity, num_tc, is_v5e


# --------------------------------------------------------------------------- #
# Single-pass kernel: pooled mean + channel MLP + rescale in one pass over x.
# --------------------------------------------------------------------------- #
def _cab_kernel(x_ref, w1_ref, w2_ref, o_ref, *, inv_hw, use_mxu, mul_in_f32):
    # x_ref: (Nb, C, HW)   w1_ref: (Cr, C)   w2_ref: (C, Cr)   o_ref: (Nb, C, HW)

    # Global average pool: accumulate in f32, divide by HW.
    pooled = jnp.sum(x_ref[...], axis=-1, dtype=jnp.float32) * inv_hw     # (Nb, C)

    w1 = w1_ref[...].astype(jnp.float32)                                  # (Cr, C)
    w2 = w2_ref[...].astype(jnp.float32)                                  # (C, Cr)

    if use_mxu:
        # Large C: MXU dots, contracting the last dims (no in-kernel transpose).
        dn = (((1,), (1,)), ((), ()))
        y1 = jax.lax.dot_general(pooled, w1, dn,
                                 preferred_element_type=jnp.float32)      # (Nb, Cr)
        y1 = jnp.maximum(y1, 0.0)
        y2 = jax.lax.dot_general(y1, w2, dn,
                                 preferred_element_type=jnp.float32)      # (Nb, C)
    else:
        # Small C: exact f32 broadcast-multiply + lane reduce (hidden under DMA).
        y1 = jnp.maximum(jnp.sum(w1[None, :, :] * pooled[:, None, :], axis=-1), 0.0)
        y2 = jnp.sum(w2[None, :, :] * y1[:, None, :], axis=-1)            # (Nb, C)

    scale = jax.nn.sigmoid(y2)                                            # (Nb, C) f32

    if mul_in_f32:
        # v5e + bf16: the VPU has no bf16 ALU, so do the multiply explicitly in
        # f32 (free; HBM-bound) and avoid quantizing the scale to bf16.
        o_ref[...] = (x_ref[...].astype(jnp.float32)
                      * scale[:, :, None]).astype(o_ref.dtype)
    else:
        o_ref[...] = (x_ref[...]
                      * scale.astype(o_ref.dtype)[:, :, None]).astype(o_ref.dtype)


def _cab_single_pass(x_flat, w1, w2, *, nb, use_mxu, mul_in_f32, vmem_limit,
                     donate_x=False):
    N, C, HW = x_flat.shape
    Cr = w1.shape[0]
    grid_n = N // nb

    kernel = functools.partial(_cab_kernel, inv_hw=1.0 / HW,
                               use_mxu=use_mxu, mul_in_f32=mul_in_f32)
    kwargs = {}
    if donate_x:
        kwargs["input_output_aliases"] = {0: 0}

    return pl.pallas_call(
        kernel,
        out_shape=jax.ShapeDtypeStruct((N, C, HW), x_flat.dtype),
        grid_spec=pltpu.PrefetchScalarGridSpec(
            num_scalar_prefetch=0,
            grid=(grid_n,),
            in_specs=[
                # Trailing dim = full HW extent: exempt from 128-divisibility,
                # only the final partial lane tile per row is masked.
                pl.BlockSpec((nb, C, HW), lambda n: (n, 0, 0)),
                pl.BlockSpec((Cr, C), lambda n: (0, 0)),   # VMEM-resident weights
                pl.BlockSpec((C, Cr), lambda n: (0, 0)),
            ],
            out_specs=pl.BlockSpec((nb, C, HW), lambda n: (n, 0, 0)),
        ),
        compiler_params=pltpu.CompilerParams(
            dimension_semantics=("parallel",),
            vmem_limit_bytes=vmem_limit,
        ),
        **kwargs,
    )(x_flat, w1, w2)


# --------------------------------------------------------------------------- #
# Two-pass HW-tiled fallback (large H*W per image, or N == 1 on a 2-TC chip).
# --------------------------------------------------------------------------- #
def _pool_sum_kernel(x_ref, sum_ref, *, hw, hw_tile, needs_mask):
    # x_ref: (C, hw_tile)   sum_ref: (C, 1) f32, resident across the HW grid axis.
    h = pl.program_id(1)

    @pl.when(h == 0)
    def _():
        sum_ref[...] = jnp.zeros_like(sum_ref)

    x = x_ref[...].astype(jnp.float32)
    if needs_mask:
        # Mask the tail of the last (overhanging) HW tile: OOB block contents
        # are unspecified and must not enter the spatial sum.
        idx = jax.lax.broadcasted_iota(jnp.int32, x_ref.shape, 1)
        x = jnp.where(h * hw_tile + idx < hw, x, 0.0)
    sum_ref[...] += jnp.sum(x, axis=-1, keepdims=True)


def _rescale_kernel(x_ref, scale_ref, o_ref, *, mul_in_f32):
    # x_ref: (C, hw_tile)   scale_ref: (C, 1) f32   o_ref: (C, hw_tile)
    if mul_in_f32:
        o_ref[...] = (x_ref[...].astype(jnp.float32) * scale_ref[...]).astype(o_ref.dtype)
    else:
        o_ref[...] = (x_ref[...] * scale_ref[...].astype(o_ref.dtype)).astype(o_ref.dtype)


def _cab_two_pass(x_flat, w1, w2, *, hw_tile, mul_in_f32, vmem_limit,
                  donate_x=False):
    N, C, HW = x_flat.shape
    num_hw = pl.cdiv(HW, hw_tile)
    needs_mask = (HW % hw_tile) != 0

    # Pass 1: pooled spatial sums, accumulator resident across the HW axis.
    pooled_sum = pl.pallas_call(
        functools.partial(_pool_sum_kernel, hw=HW, hw_tile=hw_tile,
                          needs_mask=needs_mask),
        out_shape=jax.ShapeDtypeStruct((N, C, 1), jnp.float32),
        grid_spec=pltpu.PrefetchScalarGridSpec(
            num_scalar_prefetch=0,
            grid=(N, num_hw),
            in_specs=[pl.BlockSpec((None, C, hw_tile), lambda n, h: (n, 0, h))],
            out_specs=pl.BlockSpec((None, C, 1), lambda n, h: (n, 0, 0)),
        ),
        compiler_params=pltpu.CompilerParams(
            dimension_semantics=("parallel", "arbitrary"),
            vmem_limit_bytes=vmem_limit,
        ),
    )(x_flat)

    # Tiny channel MLP + sigmoid in plain JAX (a few K FLOPs; not worth a kernel).
    pooled = pooled_sum[:, :, 0] * (1.0 / HW)                              # (N, C)
    y1 = jnp.maximum(jnp.einsum("rc,nc->nr", w1.astype(jnp.float32), pooled), 0.0)
    y2 = jax.nn.sigmoid(jnp.einsum("cr,nr->nc", w2.astype(jnp.float32), y1))
    scale = y2[:, :, None]                                                 # (N, C, 1) f32

    # Pass 2: fully parallel channel-wise rescale.
    kwargs = {}
    if donate_x:
        kwargs["input_output_aliases"] = {0: 0}
    out = pl.pallas_call(
        functools.partial(_rescale_kernel, mul_in_f32=mul_in_f32),
        out_shape=jax.ShapeDtypeStruct((N, C, HW), x_flat.dtype),
        grid_spec=pltpu.PrefetchScalarGridSpec(
            num_scalar_prefetch=0,
            grid=(N, num_hw),
            in_specs=[
                pl.BlockSpec((None, C, hw_tile), lambda n, h: (n, 0, h)),
                pl.BlockSpec((None, C, 1), lambda n, h: (n, 0, 0)),
            ],
            out_specs=pl.BlockSpec((None, C, hw_tile), lambda n, h: (n, 0, h)),
        ),
        compiler_params=pltpu.CompilerParams(
            dimension_semantics=("parallel", "parallel"),
            vmem_limit_bytes=vmem_limit,
        ),
        **kwargs,
    )(x_flat, scale)
    return out


# --------------------------------------------------------------------------- #
# Wrapper.
# --------------------------------------------------------------------------- #
def _pick_nb(n, per_image_bytes, target_bytes, prefer_multi_step):
    """Largest divisor of n whose block fits target_bytes; on 2-TC chips keep
    >= 2 grid steps when n >= 2 so both TensorCores get work."""
    best = 1
    for d in range(1, n + 1):
        if n % d:
            continue
        if d * per_image_bytes > target_bytes:
            continue
        if prefer_multi_step and n > 1 and n // d < 2:
            continue
        best = d
    return best


def cab_forward(x, w1, w2, *, target_block_bytes=None, force_mode=None,
                donate_x=False):
    """x: (N, C, H, W); w1: (C//r, C); w2: (C, C//r)."""
    N, C, H, W = x.shape
    HW = H * W
    itemsize = jnp.dtype(x.dtype).itemsize
    x_flat = x.reshape(N, C, HW)

    vmem_capacity, num_tc, is_v5e = _tpu_generation_info()
    # ~48 MiB cap on v7x (64 MiB/TC), 64 MiB on v5e/v6e (128 MiB physical).
    budget_cap = min(64 * 2**20, int(0.75 * vmem_capacity))
    if target_block_bytes is None:
        target_block_bytes = max(2 * 2**20, min(8 * 2**20, budget_cap // 6))

    per_image_bytes = C * HW * itemsize
    w_bytes = (w1.size + w2.size) * 4
    mul_in_f32 = is_v5e and (x.dtype == jnp.bfloat16)

    two_pass = per_image_bytes > target_block_bytes
    if num_tc >= 2 and N == 1 and per_image_bytes >= 2 * 2**20:
        # N==1 on a 2-TC chip: split HW across >= 2 'parallel' steps instead of
        # leaving one TensorCore idle.
        two_pass = True
    if HW < 2 * _LANE:
        two_pass = False  # cannot form lane-dense HW tiles; single pass instead
    if force_mode == "single":
        two_pass = False
    elif force_mode == "two_pass":
        two_pass = HW >= 2 * _LANE

    if two_pass:
        hw_tile = max(_LANE,
                      (target_block_bytes // max(1, C * itemsize)) // _LANE * _LANE)
        hw_tile = min(hw_tile, max(_LANE, (HW // _LANE) * _LANE))
        block_bytes = C * hw_tile * itemsize
        vmem_needed = 4 * block_bytes + 2 * w_bytes + (2 << 20)
        vmem_limit = int(min(max(32 * 2**20, vmem_needed), budget_cap))
        out_flat = _cab_two_pass(x_flat, w1, w2, hw_tile=hw_tile,
                                 mul_in_f32=mul_in_f32, vmem_limit=vmem_limit,
                                 donate_x=donate_x)
    else:
        nb = _pick_nb(N, per_image_bytes, target_block_bytes,
                      prefer_multi_step=(num_tc >= 2))
        block_bytes = nb * per_image_bytes
        vmem_needed = 4 * block_bytes + 2 * w_bytes + (2 << 20)
        vmem_limit = int(min(max(32 * 2**20, vmem_needed), budget_cap))
        if vmem_needed > budget_cap:
            # Tiny-HW / huge-C corner where HW tiling is impossible: allow up to
            # ~90% of physical VMEM rather than failing to compile.
            vmem_limit = int(min(vmem_needed, (vmem_capacity * 9) // 10))
        out_flat = _cab_single_pass(x_flat, w1, w2, nb=nb, use_mxu=(C >= 256),
                                    mul_in_f32=mul_in_f32, vmem_limit=vmem_limit,
                                    donate_x=donate_x)

    return out_flat.reshape(N, C, H, W)


def cab_reference(x, w1, w2):
    """Pure-JAX reference matching the PyTorch module."""
    pooled = jnp.mean(x, axis=(2, 3))                                     # (N, C)
    y1 = jnp.maximum(jnp.einsum("rc,nc->nr", w1, pooled), 0.0)            # (N, Cr)
    y2 = jax.nn.sigmoid(jnp.einsum("cr,nr->nc", w2, y1))                  # (N, C)
    return x * y2[:, :, None, None]


if __name__ == "__main__":
    key = jax.random.PRNGKey(0)
    k_x, k_w1, k_w2, k_x2 = jax.random.split(key, 4)

    # Shapes consistent with the module defaults: nc=32, reduction=8 -> nc//r = 4.
    N, C, reduction = 2, 32, 8
    Cr = C // reduction
    # Conv2d(kernel_size=1, bias=False) weights: (out, in, 1, 1) squeezed to (out, in).
    w1 = 0.1 * jax.random.normal(k_w1, (Cr, C), dtype=jnp.float32)
    w2 = 0.1 * jax.random.normal(k_w2, (C, Cr), dtype=jnp.float32)

    # Primary check: 16x16 spatial (HW = 256), single-pass path.
    x = jax.random.normal(k_x, (N, C, 16, 16), dtype=jnp.float32)
    out = jax.block_until_ready(cab_forward(x, w1, w2))
    ref = cab_reference(x, w1, w2)
    assert out.shape == x.shape
    assert jnp.allclose(out, ref, atol=1e-5, rtol=1e-5), "single-pass mismatch"

    # HW not a multiple of 128 (20x20 -> 400): exercises the masked lane tail of
    # the full-extent trailing block dim (no wrapper pad / slice anymore).
    x2 = jax.random.normal(k_x2, (N, C, 20, 20), dtype=jnp.float32)
    out2 = jax.block_until_ready(cab_forward(x2, w1, w2))
    ref2 = cab_reference(x2, w1, w2)
    assert jnp.allclose(out2, ref2, atol=1e-5, rtol=1e-5), "single-pass (HW=400) mismatch"

    # Force the HW-tiled two-pass fallback on the same input: exercises the
    # pooled-sum accumulator kernel (with tail masking) and the rescale kernel.
    out3 = jax.block_until_ready(cab_forward(x2, w1, w2, force_mode="two_pass"))
    assert jnp.allclose(out3, ref2, atol=1e-5, rtol=1e-5), "two-pass mismatch"

    print("KERNEL_OK")
</pallas_src>

<mosaic_0001>
module attributes {stable_mosaic.version = 11 : i64} {
  func.func @_cab_kernel(%arg0: i32, %arg1: memref<2x32x256xf32, #tpu.memory_space<vmem>>, %arg2: memref<4x32xf32, #tpu.memory_space<vmem>>, %arg3: memref<32x4xf32, #tpu.memory_space<vmem>>, %arg4: memref<2x32x256xf32, #tpu.memory_space<vmem>>) attributes {dimension_semantics = [#tpu.dimension_semantics<parallel>], iteration_bounds = array<i64: 1>, scalar_prefetch = 0 : i64, scratch_operands = 0 : i64, tpu.core_type = #tpu.core_type<tc>, window_params = [{transform_indices = @transform_0, window_bounds = array<i64: 2, 32, 256>}, {pipeline_mode = #tpu.pipeline_mode<synchronous>, transform_indices = @transform_1, window_bounds = array<i64: 4, 32>}, {pipeline_mode = #tpu.pipeline_mode<synchronous>, transform_indices = @transform_2, window_bounds = array<i64: 32, 4>}, {transform_indices = @transform_3, window_bounds = array<i64: 2, 32, 256>}]} {
    %c0 = arith.constant 0 : index
    %c0_0 = arith.constant 0 : index
    %c0_1 = arith.constant 0 : index
    %0 = vector.load %arg1[%c0, %c0_0, %c0_1] : memref<2x32x256xf32, #tpu.memory_space<vmem>>, vector<2x32x256xf32>
    %cst = arith.constant dense<0.000000e+00> : vector<2x32xf32>
    %1 = vector.multi_reduction <add>, %0, %cst [2] : vector<2x32x256xf32> to vector<2x32xf32>
    %cst_2 = arith.constant 3.906250e-03 : f32
    %2 = vector.broadcast %cst_2 : f32 to vector<2x32xf32>
    %3 = arith.mulf %1, %2 : vector<2x32xf32>
    %c0_3 = arith.constant 0 : index
    %c0_4 = arith.constant 0 : index
    %4 = vector.load %arg2[%c0_3, %c0_4] : memref<4x32xf32, #tpu.memory_space<vmem>>, vector<4x32xf32>
    %c0_5 = arith.constant 0 : index
    %c0_6 = arith.constant 0 : index
    %5 = vector.load %arg3[%c0_5, %c0_6] : memref<32x4xf32, #tpu.memory_space<vmem>>, vector<32x4xf32>
    %6 = vector.shape_cast %4 : vector<4x32xf32> to vector<1x4x32xf32>
    %7 = vector.shape_cast %3 : vector<2x32xf32> to vector<2x1x32xf32>
    %8 = vector.broadcast %6 : vector<1x4x32xf32> to vector<2x4x32xf32>
    %9 = vector.broadcast %7 : vector<2x1x32xf32> to vector<2x4x32xf32>
    %10 = arith.mulf %8, %9 : vector<2x4x32xf32>
    %cst_7 = arith.constant dense<0.000000e+00> : vector<2x4xf32>
    %11 = vector.multi_reduction <add>, %10, %cst_7 [2] : vector<2x4x32xf32> to vector<2x4xf32>
    %cst_8 = arith.constant 0.000000e+00 : f32
    %12 = vector.broadcast %cst_8 : f32 to vector<2x4xf32>
    %13 = arith.maximumf %11, %12 : vector<2x4xf32>
    %14 = vector.shape_cast %5 : vector<32x4xf32> to vector<1x32x4xf32>
    %15 = vector.shape_cast %13 : vector<2x4xf32> to vector<2x1x4xf32>
    %16 = vector.broadcast %14 : vector<1x32x4xf32> to vector<2x32x4xf32>
    %17 = vector.broadcast %15 : vector<2x1x4xf32> to vector<2x32x4xf32>
    %18 = arith.mulf %16, %17 : vector<2x32x4xf32>
    %cst_9 = arith.constant dense<0.000000e+00> : vector<2x32xf32>
    %19 = vector.multi_reduction <add>, %18, %cst_9 [2] : vector<2x32x4xf32> to vector<2x32xf32>
    %20 = arith.negf %19 : vector<2x32xf32>
    %21 = math.exp %20 : vector<2x32xf32>
    %cst_10 = arith.constant 1.000000e+00 : f32
    %22 = vector.broadcast %cst_10 : f32 to vector<2x32xf32>
    %23 = arith.addf %22, %21 : vector<2x32xf32>
    %24 = arith.divf %22, %23 : vector<2x32xf32>
    %c0_11 = arith.constant 0 : index
    %c0_12 = arith.constant 0 : index
    %c0_13 = arith.constant 0 : index
    %25 = vector.load %arg1[%c0_11, %c0_12, %c0_13] : memref<2x32x256xf32, #tpu.memory_space<vmem>>, vector<2x32x256xf32>
    %26 = vector.shape_cast %24 : vector<2x32xf32> to vector<2x32x1xf32>
    %27 = vector.broadcast %26 : vector<2x32x1xf32> to vector<2x32x256xf32>
    %28 = arith.mulf %25, %27 : vector<2x32x256xf32>
    %c0_14 = arith.constant 0 : index
    %c0_15 = arith.constant 0 : index
    %c0_16 = arith.constant 0 : index
    %29 = vector.load %arg4[%c0_14, %c0_15, %c0_16] : memref<2x32x256xf32, #tpu.memory_space<vmem>>, vector<2x32x256xf32>
    tpu.vector_store %arg4[%c0_14, %c0_15, %c0_16], %28 {strides = array<i32>} : memref<2x32x256xf32, #tpu.memory_space<vmem>>, vector<2x32x256xf32>,
    return
  }
  func.func @transform_0(%arg0: i32) -> (i32, i32, i32) {
    %c0_i32 = arith.constant 0 : i32
    %c0_i32_0 = arith.constant 0 : i32
    %c0_i32_1 = arith.constant 0 : i32
    return %arg0, %c0_i32, %c0_i32_0 : i32, i32, i32
  }
  func.func @transform_1(%arg0: i32) -> (i32, i32) {
    %c0_i32 = arith.constant 0 : i32
    %c0_i32_0 = arith.constant 0 : i32
    %c0_i32_1 = arith.constant 0 : i32
    return %c0_i32, %c0_i32_0 : i32, i32
  }
  func.func @transform_2(%arg0: i32) -> (i32, i32) {
    %c0_i32 = arith.constant 0 : i32
    %c0_i32_0 = arith.constant 0 : i32
    %c0_i32_1 = arith.constant 0 : i32
    return %c0_i32, %c0_i32_0 : i32, i32
  }
  func.func @transform_3(%arg0: i32) -> (i32, i32, i32) {
    %c0_i32 = arith.constant 0 : i32
    %c0_i32_0 = arith.constant 0 : i32
    %c0_i32_1 = arith.constant 0 : i32
    return %arg0, %c0_i32, %c0_i32_0 : i32, i32, i32
  }
}

</mosaic_0001>

<llo_original>
// kernel: tpu_custom_call.1
$region0: #{tpu_custom_call.1}
  #allocation0 [shape = 'u32[]', space=smem, size = 0x4, offset = 0x4, fixed_abs, tag = 'smem constant byte address 0x4 - core index']
  #allocation1 [shape = 'u32[144,128]{1,0:T(1,128)}', space=vmem, size = 0x12000, scoped, tag = 'internal scratch']
  %s0 = inlined_call_operand.hbm [shape: f32[2,32,256], index: 0, kind: input, shape index: {}]
  %s1 = inlined_call_operand.vmem [shape: f32[4,32], index: 1, kind: input, shape index: {}]
  %s2 = inlined_call_operand.vmem [shape: f32[32,4], index: 2, kind: input, shape index: {}]
  %s3 = inlined_call_operand.hbm [shape: f32[2,32,256], index: 3, kind: output, shape index: {}]
  %s4 = sld [smem:[#allocation0]]
  $region26: #{tpu_custom_call.1} parent=0
    _
  %s6 = ssub.s32 1, %s4
  %s7 = scalar_select 0, %s6, %s4
  $region1: #{tpu_custom_call.1} parent=0
    #allocation2 [shape = 'u8[65536]{0}', space=vmem, size = 0x10000, scoped, tag = 'input window, operand 0, single buffered']
    #allocation3 [shape = 's32[1]{0}', space=sflag, size = 0x4, scoped, tag = 'scoped memory for tpu_custom_call.1']
    #allocation4 [shape = 's32[1]{0}', space=sflag, size = 0x4, scoped, tag = 'scoped memory for tpu_custom_call.1']
    #allocation5 [shape = 'u8[65536]{0}', space=vmem, size = 0x10000, scoped, tag = 'output window, operand 0, single buffered']
    %8 = vsyncpa [#allocation3], 0
    %9 = vsyncpa [#allocation4], 0
    // Predicated region
    $region2: #{tpu_custom_call.1} parent=1 // pred_check
      _
    $region3: #{tpu_custom_call.1} parent=1 // pred_check_branch
      %11 = sbr.rel (0) target = $region5
    $region4: #{tpu_custom_call.1} parent=1 // pred_region
      %s13 = ssub.s32 2048, 2048
      %14 = vsyncadd [#allocation3], %s13
      %s15 = sshll.u32 [#allocation2], 4
      %s16 = int_to_ptr.vmem [resolvable:$true] %s15
      %21 = dma.hbm_to_vmem [thread:$0]  %s0, 2048, %s16, [#allocation3], 256, 256, 16
    $region5: #{tpu_custom_call.1} parent=1 // pred_fallthru
      _
    // Predicated region
    $region6: #{tpu_custom_call.1} parent=1 // pred_check
      _
    $region7: #{tpu_custom_call.1} parent=1 // pred_check_branch
      %23 = sbr.rel (0) target = $region9
    $region8: #{tpu_custom_call.1} parent=1 // pred_region
      _
    $region9: #{tpu_custom_call.1} parent=1 // pred_fallthru
      _
    // Predicated region
    $region10: #{tpu_custom_call.1} parent=1 // pred_check
      _
    $region11: #{tpu_custom_call.1} parent=1 // pred_check_branch
      %25 = sbr.rel (0) target = $region13
    $region12: #{tpu_custom_call.1} parent=1 // pred_region
      _
    $region13: #{tpu_custom_call.1} parent=1 // pred_fallthru
      _
    // Predicated region
    $region14: #{tpu_custom_call.1} parent=1 // pred_check
      _
    $region15: #{tpu_custom_call.1} parent=1 // pred_check_branch
      %27 = sbr.rel (0) target = $region17
    $region16: #{tpu_custom_call.1} parent=1 // pred_region
      %28 = dma.done [#allocation3], 2048
    $region17: #{tpu_custom_call.1} parent=1 // pred_fallthru
      _
    %v29 = vld [vmem:[#allocation2] sm:$0xff]
    %v30 = vld [vmem:[#allocation2 + $0x8] sm:$0xff]
    %v31 = vld [vmem:[#allocation2 + $0x10] sm:$0xff]
    %v32 = vld [vmem:[#allocation2 + $0x18] sm:$0xff]
    %v33 = vld [vmem:[#allocation2 + $0x20] sm:$0xff]
    %v34 = vld [vmem:[#allocation2 + $0x28] sm:$0xff]
    %v35 = vld [vmem:[#allocation2 + $0x30] sm:$0xff]
    %v36 = vld [vmem:[#allocation2 + $0x38] sm:$0xff]
    %v37 = vld [vmem:[#allocation2 + $0x40] sm:$0xff]
    %v38 = vld [vmem:[#allocation2 + $0x48] sm:$0xff]
    %v39 = vld [vmem:[#allocation2 + $0x50] sm:$0xff]
    %v40 = vld [vmem:[#allocation2 + $0x58] sm:$0xff]
    %v41 = vld [vmem:[#allocation2 + $0x60] sm:$0xff]
    %v42 = vld [vmem:[#allocation2 + $0x68] sm:$0xff]
    %v43 = vld [vmem:[#allocation2 + $0x70] sm:$0xff]
    %v44 = vld [vmem:[#allocation2 + $0x78] sm:$0xff]
    %v45 = vadd.f32 %v29, %v30
    %46 = vadd.xlane.f32.xlu0 %v45
    %v47 = vpop.xlane.xlu0 %46
    %v48 = vadd.f32 %v31, %v32
    %49 = vadd.xlane.f32.xlu0 %v48
    %v50 = vpop.xlane.xlu0 %49
    %v51 = vadd.f32 %v33, %v34
    %52 = vadd.xlane.f32.xlu0 %v51
    %v53 = vpop.xlane.xlu0 %52
    %v54 = vadd.f32 %v35, %v36
    %55 = vadd.xlane.f32.xlu0 %v54
    %v56 = vpop.xlane.xlu0 %55
    %v57 = vadd.f32 %v37, %v38
    %58 = vadd.xlane.f32.xlu0 %v57
    %v59 = vpop.xlane.xlu0 %58
    %v60 = vadd.f32 %v39, %v40
    %61 = vadd.xlane.f32.xlu0 %v60
    %v62 = vpop.xlane.xlu0 %61
    %v63 = vadd.f32 %v41, %v42
    %64 = vadd.xlane.f32.xlu0 %v63
    %v65 = vpop.xlane.xlu0 %64
    %v66 = vadd.f32 %v43, %v44
    %67 = vadd.xlane.f32.xlu0 %v66
    %v68 = vpop.xlane.xlu0 %67
    %v69 = vmul.f32 %v47, 0.00390625
    %v70 = vmul.f32 %v50, 0.00390625
    %v71 = vmul.f32 %v53, 0.00390625
    %v72 = vmul.f32 %v56, 0.00390625
    %v73 = vmul.f32 %v59, 0.00390625
    %v74 = vmul.f32 %v62, 0.00390625
    %v75 = vmul.f32 %v65, 0.00390625
    %v76 = vmul.f32 %v68, 0.00390625
    %v77 = vld [vmem:[%s1] sm:$0xf]
    %v78 = vld [vmem:[%s2] sm:$0xff]
    %v79 = vld [vmem:[%s2 + $0x8] sm:$0xff]
    %v80 = vld [vmem:[%s2 + $0x10] sm:$0xff]
    %v81 = vld [vmem:[%s2 + $0x18] sm:$0xff]
    %v90 = vlaneseq
    %v91 = vand.u32 %v90, 127
    %v92 = vlaneseq
    %v93 = vshrl.u32 %v92, 7
    %v94 = vsub.s32 %v91, %v93
    %v95 = vrot.slane %v69, %v94
    %v96 = vadd.s32 %v91, 4294967288
    %v97 = vlaneseq
    %v98 = vshrl.u32 %v97, 7
    %v99 = vsub.s32 %v96, %v98
    %v100 = vrot.slane %v70, %v99
    %vm101 = vcmask 130112
    %v102 = vsel %vm101, %v100, %v95
    %v103 = vadd.s32 %v91, 4294967280
    %v104 = vlaneseq
    %v105 = vshrl.u32 %v104, 7
    %v106 = vsub.s32 %v103, %v105
    %v107 = vrot.slane %v71, %v106
    %vm108 = vcmask 195712
    %v109 = vsel %vm108, %v107, %v102
    %v110 = vadd.s32 %v91, 4294967272
    %v111 = vlaneseq
    %v112 = vshrl.u32 %v111, 7
    %v113 = vsub.s32 %v110, %v112
    %v114 = vrot.slane %v72, %v113
    %vm115 = vcmask 261312
    %v116 = vsel %vm115, %v114, %v109
    %v117 = vlaneseq
    %v118 = vshrl.u32 %v117, 7
    %v119 = vsub.s32 %v91, %v118
    %v120 = vrot.slane %v73, %v119
    %v121 = vlaneseq
    %v122 = vshrl.u32 %v121, 7
    %v123 = vsub.s32 %v96, %v122
    %v124 = vrot.slane %v74, %v123
    %v125 = vsel %vm101, %v124, %v120
    %v126 = vlaneseq
    %v127 = vshrl.u32 %v126, 7
    %v128 = vsub.s32 %v103, %v127
    %v129 = vrot.slane %v75, %v128
    %v130 = vsel %vm108, %v129, %v125
    %v131 = vlaneseq
    %v132 = vshrl.u32 %v131, 7
    %v133 = vsub.s32 %v110, %v132
    %v134 = vrot.slane %v76, %v133
    %v135 = vsel %vm115, %v134, %v130
    %vm136 = vcmask 1042434
    %v137 = vsel %vm136, %v116, %v116
    %vm138 = vcmask 1043459
    %v139 = vsel %vm138, %v116, %v137
    %v140 = vsel %vm136, %v135, %v135
    %v141 = vsel %vm138, %v135, %v140
    %v144 = vmul.f32 %v77, %v139
    %v145 = vmul.f32 %v77, %v141
    %vm146 = vcmask 257024
    %v147 = vsel %vm146, %v144, 0.0
    %148 = vadd.xlane.f32.xlu0 %v147
    %v149 = vpop.xlane.xlu0 %148
    %v150 = vsel %vm146, %v145, 0.0
    %151 = vadd.xlane.f32.xlu0 %v150
    %v152 = vpop.xlane.xlu0 %151
    %v153 = vmax.f32 %v149, 0.0
    %v154 = vmax.f32 %v152, 0.0
    %v157 = vlaneseq
    %v158 = vshrl.u32 %v157, 7
    %v159 = vsub.s32 %v91, %v158
    %v160 = vrot.slane %v153, %v159
    %v161 = vlaneseq
    %v162 = vshrl.u32 %v161, 7
    %v163 = vsub.s32 %v91, %v162
    %v164 = vrot.slane %v154, %v163
    %v165 = vsel %vm136, %v160, %v160
    %v166 = vsel %vm138, %v160, %v165
    %vm167 = vcmask 1044484
    %v168 = vsel %vm167, %v160, %v166
    %vm169 = vcmask 1045509
    %v170 = vsel %vm169, %v160, %v168
    %vm171 = vcmask 1046534
    %v172 = vsel %vm171, %v160, %v170
    %vm173 = vcmask 1047559
    %v174 = vsel %vm173, %v160, %v172
    %v175 = vsel %vm136, %v164, %v164
    %v176 = vsel %vm138, %v164, %v175
    %v177 = vsel %vm167, %v164, %v176
    %v178 = vsel %vm169, %v164, %v177
    %v179 = vsel %vm171, %v164, %v178
    %v180 = vsel %vm173, %v164, %v179
    %v183 = vmul.f32 %v78, %v174
    %v184 = vmul.f32 %v79, %v174
    %v185 = vmul.f32 %v80, %v174
    %v186 = vmul.f32 %v81, %v174
    %v187 = vmul.f32 %v78, %v180
    %v188 = vmul.f32 %v79, %v180
    %v189 = vmul.f32 %v80, %v180
    %v190 = vmul.f32 %v81, %v180
    %vm191 = vcmask 31744
    %v192 = vsel %vm191, %v183, 0.0
    %193 = vadd.xlane.f32.xlu0 %v192
    %v194 = vpop.xlane.xlu0 %193
    %v195 = vsel %vm191, %v184, 0.0
    %196 = vadd.xlane.f32.xlu0 %v195
    %v197 = vpop.xlane.xlu0 %196
    %v198 = vsel %vm191, %v185, 0.0
    %199 = vadd.xlane.f32.xlu0 %v198
    %v200 = vpop.xlane.xlu0 %199
    %v201 = vsel %vm191, %v186, 0.0
    %202 = vadd.xlane.f32.xlu0 %v201
    %v203 = vpop.xlane.xlu0 %202
    %v204 = vsel %vm191, %v187, 0.0
    %205 = vadd.xlane.f32.xlu0 %v204
    %v206 = vpop.xlane.xlu0 %205
    %v207 = vsel %vm191, %v188, 0.0
    %208 = vadd.xlane.f32.xlu0 %v207
    %v209 = vpop.xlane.xlu0 %208
    %v210 = vsel %vm191, %v189, 0.0
    %211 = vadd.xlane.f32.xlu0 %v210
    %v212 = vpop.xlane.xlu0 %211
    %v213 = vsel %vm191, %v190, 0.0
    %214 = vadd.xlane.f32.xlu0 %v213
    %v215 = vpop.xlane.xlu0 %214
    %v216 = vxor.u32 %v194, 2147483648
    %v217 = vxor.u32 %v197, 2147483648
    %v218 = vxor.u32 %v200, 2147483648
    %v219 = vxor.u32 %v203, 2147483648
    %v220 = vxor.u32 %v206, 2147483648
    %v221 = vxor.u32 %v209, 2147483648
    %v222 = vxor.u32 %v212, 2147483648
    %v223 = vxor.u32 %v215, 2147483648
    %v224 = vmul.f32 %v216, 1.442695
    %v225 = vpow.pop %v224
    %v226 = vmul.f32 %v217, 1.442695
    %v227 = vpow.pop %v226
    %v228 = vmul.f32 %v218, 1.442695
    %v229 = vpow.pop %v228
    %v230 = vmul.f32 %v219, 1.442695
    %v231 = vpow.pop %v230
    %v232 = vmul.f32 %v220, 1.442695
    %v233 = vpow.pop %v232
    %v234 = vmul.f32 %v221, 1.442695
    %v235 = vpow.pop %v234
    %v236 = vmul.f32 %v222, 1.442695
    %v237 = vpow.pop %v236
    %v238 = vmul.f32 %v223, 1.442695
    %v239 = vpow.pop %v238
    %v240 = vadd.f32 %v225, 1.0
    %v241 = vadd.f32 %v227, 1.0
    %v242 = vadd.f32 %v229, 1.0
    %v243 = vadd.f32 %v231, 1.0
    %v244 = vadd.f32 %v233, 1.0
    %v245 = vadd.f32 %v235, 1.0
    %v246 = vadd.f32 %v237, 1.0
    %v247 = vadd.f32 %v239, 1.0
    %v248 = vrcp.pop %v240
    %v249 = vmul.f32 1.0, %v248
    %v250 = vrcp.pop %v241
    %v251 = vmul.f32 1.0, %v250
    %v252 = vrcp.pop %v242
    %v253 = vmul.f32 1.0, %v252
    %v254 = vrcp.pop %v243
    %v255 = vmul.f32 1.0, %v254
    %v256 = vrcp.pop %v244
    %v257 = vmul.f32 1.0, %v256
    %v258 = vrcp.pop %v245
    %v259 = vmul.f32 1.0, %v258
    %v260 = vrcp.pop %v246
    %v261 = vmul.f32 1.0, %v260
    %v262 = vrcp.pop %v247
    %v263 = vmul.f32 1.0, %v262
    %v264 = vmul.f32 %v29, %v249
    %v265 = vmul.f32 %v30, %v249
    %v266 = vmul.f32 %v31, %v251
    %v267 = vmul.f32 %v32, %v251
    %v268 = vmul.f32 %v33, %v253
    %v269 = vmul.f32 %v34, %v253
    %v270 = vmul.f32 %v35, %v255
    %v271 = vmul.f32 %v36, %v255
    %v272 = vmul.f32 %v37, %v257
    %v273 = vmul.f32 %v38, %v257
    %v274 = vmul.f32 %v39, %v259
    %v275 = vmul.f32 %v40, %v259
    %v276 = vmul.f32 %v41, %v261
    %v277 = vmul.f32 %v42, %v261
    %v278 = vmul.f32 %v43, %v263
    %v279 = vmul.f32 %v44, %v263
    %280 = vst [vmem:[#allocation5] sm:$0xff] %v264
    %281 = vst [vmem:[#allocation5 + $0x8] sm:$0xff] %v265
    %282 = vst [vmem:[#allocation5 + $0x10] sm:$0xff] %v266
    %283 = vst [vmem:[#allocation5 + $0x18] sm:$0xff] %v267
    %284 = vst [vmem:[#allocation5 + $0x20] sm:$0xff] %v268
    %285 = vst [vmem:[#allocation5 + $0x28] sm:$0xff] %v269
    %286 = vst [vmem:[#allocation5 + $0x30] sm:$0xff] %v270
    %287 = vst [vmem:[#allocation5 + $0x38] sm:$0xff] %v271
    %288 = vst [vmem:[#allocation5 + $0x40] sm:$0xff] %v272
    %289 = vst [vmem:[#allocation5 + $0x48] sm:$0xff] %v273
    %290 = vst [vmem:[#allocation5 + $0x50] sm:$0xff] %v274
    %291 = vst [vmem:[#allocation5 + $0x58] sm:$0xff] %v275
    %292 = vst [vmem:[#allocation5 + $0x60] sm:$0xff] %v276
    %293 = vst [vmem:[#allocation5 + $0x68] sm:$0xff] %v277
    %294 = vst [vmem:[#allocation5 + $0x70] sm:$0xff] %v278
    %295 = vst [vmem:[#allocation5 + $0x78] sm:$0xff] %v279
    // Predicated region
    $region18: #{tpu_custom_call.1} parent=1 // pred_check
      _
    $region19: #{tpu_custom_call.1} parent=1 // pred_check_branch
      %297 = sbr.rel (0) target = $region21
    $region20: #{tpu_custom_call.1} parent=1 // pred_region
      %s299 = ssub.s32 2048, 2048
      %300 = vsyncadd [#allocation4], %s299
      %s301 = sshll.u32 [#allocation5], 4
      %s302 = int_to_ptr.vmem [resolvable:$true] %s301
      %307 = dma.vmem_to_hbm [thread:$0]  %s302, 2048, %s3, [#allocation4], 256, 256, 16
    $region21: #{tpu_custom_call.1} parent=1 // pred_fallthru
      _
    // Predicated region
    $region22: #{tpu_custom_call.1} parent=1 // pred_check
      _
    $region23: #{tpu_custom_call.1} parent=1 // pred_check_branch
      %309 = sbr.rel (0) target = $region25
    $region24: #{tpu_custom_call.1} parent=1 // pred_region
      %310 = dma.done [#allocation4], 2048
    $region25: #{tpu_custom_call.1} parent=1 // pred_fallthru
      _
    %311 = vsyncpa [#allocation3], 1
    %312 = vsyncpa [#allocation4], 1

</llo_original>
